<compile_context>
chip_gen: v5e
topology: v5e:2x2
jax: 0.10.0
libtpu: 0.0.40
codegen_flags: <defaults>
</compile_context>

<pallas_src>
import jax
import jax.numpy as jnp
from jax import lax
from jax.experimental import pallas as pl
from jax.experimental.pallas import tpu as pltpu


def attflat_kernel(x_ref, mask_ref, w1_ref, b1_ref, w2_ref, b2_ref,
                   wm_ref, bm_ref, o_ref):
    Bt, S, H = x_ref.shape
    G = w2_ref.shape[1]

    x = x_ref[...]                                               # (Bt, S, H)
    x_tok = x.reshape(Bt * S, H)                                 # token-parallel slab

    # PositionWiseFFN: dense2(dropout(relu(dense1(x)))); dropout == identity (eval).
    h = jnp.dot(x_tok, w1_ref[...], preferred_element_type=jnp.float32)
    h = jnp.maximum(h + b1_ref[...].astype(jnp.float32), 0.0)    # (Bt*S, 2H) f32
    att = jnp.dot(h.astype(x.dtype), w2_ref[...],
                  preferred_element_type=jnp.float32)
    att = att + b2_ref[...].astype(jnp.float32)                  # (Bt*S, G) f32
    att = att.reshape(Bt, S, G)

    # att.masked_fill(mask, -65504.0) -- mask broadcast over the glimpse dim.
    att = jnp.where(mask_ref[...] != 0, -65504.0, att)           # (Bt, S, G)

    # softmax over the sequence axis (PyTorch dim=1), kept in f32.
    att = att - jnp.max(att, axis=1, keepdims=True)
    p = jnp.exp(att)
    denom = jnp.sum(p, axis=1, keepdims=True)                    # (Bt, 1, G)
    att = p * pl.reciprocal(denom, approx=True)                  # (Bt, S, G)

    xf = x.astype(jnp.float32)
    if G == 1:
        # VPU multiply + sublane reduce over S: avoids an M=1 MXU pass.
        x_flat = jnp.sum(att * xf, axis=1)                       # (Bt, H)
    else:
        # Contract S directly (no explicit att.T): (Bt, G, H).
        x_att = lax.dot_general(att, xf,
                                dimension_numbers=(((1,), (1,)), ((0,), (0,))),
                                preferred_element_type=jnp.float32)
        x_flat = x_att.reshape(Bt, G * H)                        # glimpse-major cat

    # linear_merge, batched over the whole tile.
    y = jnp.dot(x_flat.astype(x.dtype), wm_ref[...],
                preferred_element_type=jnp.float32)
    y = y + bm_ref[...].astype(jnp.float32)
    o_ref[...] = y.astype(o_ref.dtype)                           # (Bt, out_dim)


def _choose_batch_tile(B, S, H, G, out_dim, itemsize, vmem_budget_bytes):
    """Largest Bt with Bt*S ~>= 256 MXU rows that fits the VMEM budget."""
    bt = max(1, pl.cdiv(256, S))

    def vmem_est(bt):
        rows = bt * S
        x_tile = 2 * bt * S * H * itemsize               # double-buffered input blocks
        hidden = rows * 2 * H * 4                        # f32 dense1 activation
        attn = 2 * rows * max(G, 8) * 4                  # logits + probs (f32)
        weights = (H * 2 * H + 2 * H * G + G * H * out_dim) * itemsize
        out = 2 * bt * out_dim * 4
        return x_tile + hidden + attn + weights + out

    while bt > 1 and vmem_est(bt) > vmem_budget_bytes:
        bt //= 2
    if bt >= B:
        return B                       # single grid step: block == full batch dim
    # Multi-step: keep the output block's sublane dim a multiple of 8.
    return min(B, ((bt + 7) // 8) * 8)


def att_flat(x, params, x_mask=None, *, vmem_limit_bytes=48 * 1024 * 1024):
    """x: (B, S, H).  x_mask: optional bool (B, 1, 1, S) (True == masked)."""
    w1, b1, w2, b2, wm, bm = params
    B, S, H = x.shape
    G = w2.shape[1]
    out_dim = wm.shape[1]

    # Sublane-oriented mask (B, S, 1): no lane->sublane reshape inside the kernel.
    if x_mask is None:
        mask = jnp.zeros((B, S, 1), jnp.int32)
    else:
        mask = x_mask.reshape(B, S).astype(jnp.int32)[:, :, None]

    Bt = _choose_batch_tile(B, S, H, G, out_dim, jnp.dtype(x.dtype).itemsize,
                            vmem_budget_bytes=vmem_limit_bytes - (8 << 20))
    B_pad = pl.cdiv(B, Bt) * Bt
    if B_pad != B:
        # Padded rows are unmasked zeros -> softmax stays finite; sliced off below.
        x = jnp.pad(x, ((0, B_pad - B), (0, 0), (0, 0)))
        mask = jnp.pad(mask, ((0, B_pad - B), (0, 0), (0, 0)))

    def build(weight_buffering):
        # Constant-index-map weights never get re-DMA'd; Buffered(1) drops the
        # pointless second pipeline buffer and frees VMEM for a bigger Bt.
        wkw = dict(pipeline_mode=pl.Buffered(1)) if weight_buffering else {}

        def wspec(shape):
            return pl.BlockSpec(shape, lambda b: (0, 0), **wkw)

        return pl.pallas_call(
            attflat_kernel,
            out_shape=jax.ShapeDtypeStruct((B_pad, out_dim), x.dtype),
            grid_spec=pltpu.PrefetchScalarGridSpec(
                num_scalar_prefetch=0,
                grid=(B_pad // Bt,),
                in_specs=[
                    pl.BlockSpec((Bt, S, H), lambda b: (b, 0, 0)),   # x
                    pl.BlockSpec((Bt, S, 1), lambda b: (b, 0, 0)),   # mask
                    wspec((H, 2 * H)),                               # dense1 W
                    wspec((1, 2 * H)),                               # dense1 b
                    wspec((2 * H, G)),                               # dense2 W
                    wspec((1, G)),                                   # dense2 b
                    wspec((G * H, out_dim)),                         # linear_merge W
                    wspec((1, out_dim)),                             # linear_merge b
                ],
                out_specs=pl.BlockSpec((Bt, out_dim), lambda b: (b, 0)),
            ),
            compiler_params=pltpu.CompilerParams(
                dimension_semantics=("parallel",),
                vmem_limit_bytes=vmem_limit_bytes),
        )

    args = (x, mask, w1, b1, w2, b2, wm, bm)
    try:
        out = build(True)(*args)
    except Exception:  # pragma: no cover - fallback if pipeline_mode unsupported
        out = build(False)(*args)
    return out[:B]


def att_flat_reference(x, params, x_mask=None):
    """Pure-JAX f32 reference mirroring the PyTorch forward."""
    w1, b1, w2, b2, wm, bm = [p.astype(jnp.float32) for p in params]
    B, S, H = x.shape
    xf = x.astype(jnp.float32)
    att = jnp.maximum(xf @ w1 + b1, 0.0) @ w2 + b2                  # (B, S, G)
    if x_mask is not None:
        att = jnp.where(x_mask.reshape(B, S, 1), -65504.0, att)
    att = jax.nn.softmax(att, axis=1)
    x_att = jnp.einsum('bsg,bsh->bgh', att, xf).reshape(B, -1)      # (B, G*H)
    return x_att @ wm + bm


if __name__ == "__main__":
    B, S, H = 2, 8, 32
    G = 1           # glimpses
    OUT = 32        # out_dim

    key = jax.random.PRNGKey(0)
    ks = jax.random.split(key, 8)

    # Deterministic synthetic parameters (shapes from the module __init__).
    w1 = jax.random.normal(ks[0], (H, 2 * H), jnp.float32) * 0.05     # dense1
    b1 = jax.random.normal(ks[1], (1, 2 * H), jnp.float32) * 0.05
    w2 = jax.random.normal(ks[2], (2 * H, G), jnp.float32) * 0.05     # dense2
    b2 = jax.random.normal(ks[3], (1, G), jnp.float32) * 0.05
    wm = jax.random.normal(ks[4], (G * H, OUT), jnp.float32) * 0.05   # linear_merge
    bm = jax.random.normal(ks[5], (1, OUT), jnp.float32) * 0.05
    params = (w1, b1, w2, b2, wm, bm)

    x = jax.random.normal(ks[6], (B, S, H), jnp.float32)
    # Padding mask (B, 1, 1, S): mask the last two sequence positions of batch 1.
    x_mask = jnp.zeros((B, 1, 1, S), bool).at[1, 0, 0, -2:].set(True)

    # f32 path, with and without mask.
    out = jax.block_until_ready(att_flat(x, params, x_mask))
    ref = att_flat_reference(x, params, x_mask)
    assert out.shape == (B, OUT)
    assert jnp.allclose(out, ref, atol=5e-3, rtol=5e-3)

    out_nomask = jax.block_until_ready(att_flat(x, params, None))
    assert jnp.allclose(out_nomask, att_flat_reference(x, params, None),
                        atol=5e-3, rtol=5e-3)

    # bf16 end-to-end path (MXU-native on v6e/v7x), f32 accumulation in-kernel.
    x_bf = x.astype(jnp.bfloat16)
    params_bf = tuple(p.astype(jnp.bfloat16) for p in params)
    out_bf = jax.block_until_ready(att_flat(x_bf, params_bf, x_mask))
    assert out_bf.shape == (B, OUT)
    assert jnp.allclose(out_bf.astype(jnp.float32),
                        att_flat_reference(x_bf, params_bf, x_mask),
                        atol=5e-2, rtol=5e-2)

    print("KERNEL_OK")
</pallas_src>

<mosaic_0001>
module attributes {stable_mosaic.version = 11 : i64} {
  func.func @attflat_kernel(%arg0: i32, %arg1: memref<2x8x32xf32, #tpu.memory_space<vmem>>, %arg2: memref<2x8x1xi32, #tpu.memory_space<vmem>>, %arg3: memref<32x64xf32, #tpu.memory_space<vmem>>, %arg4: memref<1x64xf32, #tpu.memory_space<vmem>>, %arg5: memref<64x1xf32, #tpu.memory_space<vmem>>, %arg6: memref<1x1xf32, #tpu.memory_space<vmem>>, %arg7: memref<32x32xf32, #tpu.memory_space<vmem>>, %arg8: memref<1x32xf32, #tpu.memory_space<vmem>>, %arg9: memref<2x32xf32, #tpu.memory_space<vmem>>) attributes {dimension_semantics = [#tpu.dimension_semantics<parallel>], iteration_bounds = array<i64: 1>, scalar_prefetch = 0 : i64, scratch_operands = 0 : i64, tpu.core_type = #tpu.core_type<tc>, window_params = [{transform_indices = @transform_0, window_bounds = array<i64: 2, 8, 32>}, {transform_indices = @transform_1, window_bounds = array<i64: 2, 8, 1>}, {pipeline_mode = #tpu.pipeline_mode<synchronous>, transform_indices = @transform_2, window_bounds = array<i64: 32, 64>}, {pipeline_mode = #tpu.pipeline_mode<synchronous>, transform_indices = @transform_3, window_bounds = array<i64: 1, 64>}, {pipeline_mode = #tpu.pipeline_mode<synchronous>, transform_indices = @transform_4, window_bounds = array<i64: 64, 1>}, {pipeline_mode = #tpu.pipeline_mode<synchronous>, transform_indices = @transform_5, window_bounds = array<i64: 1, 1>}, {pipeline_mode = #tpu.pipeline_mode<synchronous>, transform_indices = @transform_6, window_bounds = array<i64: 32, 32>}, {pipeline_mode = #tpu.pipeline_mode<synchronous>, transform_indices = @transform_7, window_bounds = array<i64: 1, 32>}, {transform_indices = @transform_8, window_bounds = array<i64: 2, 32>}]} {
    %c0 = arith.constant 0 : index
    %c0_0 = arith.constant 0 : index
    %c0_1 = arith.constant 0 : index
    %0 = vector.load %arg1[%c0, %c0_0, %c0_1] : memref<2x8x32xf32, #tpu.memory_space<vmem>>, vector<2x8x32xf32>
    %1 = vector.shape_cast %0 : vector<2x8x32xf32> to vector<16x32xf32>
    %c0_2 = arith.constant 0 : index
    %c0_3 = arith.constant 0 : index
    %2 = vector.load %arg3[%c0_2, %c0_3] : memref<32x64xf32, #tpu.memory_space<vmem>>, vector<32x64xf32>
    %cst = arith.constant dense<0.000000e+00> : vector<16x64xf32>
    %3 = tpu.matmul %1, %2, %cst {dimension_numbers = #tpu.dot_dimension_numbers<[1], [0], [0], [1], [0, 0, 1, 1], [], []>} : vector<16x32xf32>, vector<32x64xf32>, vector<16x64xf32> -> vector<16x64xf32>
    %c0_4 = arith.constant 0 : index
    %c0_5 = arith.constant 0 : index
    %4 = vector.load %arg4[%c0_4, %c0_5] : memref<1x64xf32, #tpu.memory_space<vmem>>, vector<1x64xf32>
    %5 = vector.broadcast %4 : vector<1x64xf32> to vector<16x64xf32>
    %6 = arith.addf %3, %5 : vector<16x64xf32>
    %cst_6 = arith.constant 0.000000e+00 : f32
    %7 = vector.broadcast %cst_6 : f32 to vector<16x64xf32>
    %8 = arith.maximumf %6, %7 : vector<16x64xf32>
    %c0_7 = arith.constant 0 : index
    %c0_8 = arith.constant 0 : index
    %9 = vector.load %arg5[%c0_7, %c0_8] : memref<64x1xf32, #tpu.memory_space<vmem>>, vector<64x1xf32>
    %cst_9 = arith.constant dense<0.000000e+00> : vector<16x1xf32>
    %10 = tpu.matmul %8, %9, %cst_9 {dimension_numbers = #tpu.dot_dimension_numbers<[1], [0], [0], [1], [0, 0, 1, 1], [], []>} : vector<16x64xf32>, vector<64x1xf32>, vector<16x1xf32> -> vector<16x1xf32>
    %c0_10 = arith.constant 0 : index
    %c0_11 = arith.constant 0 : index
    %11 = vector.load %arg6[%c0_10, %c0_11] : memref<1x1xf32, #tpu.memory_space<vmem>>, vector<1x1xf32>
    %12 = vector.broadcast %11 : vector<1x1xf32> to vector<16x1xf32>
    %13 = arith.addf %10, %12 : vector<16x1xf32>
    %14 = vector.shape_cast %13 : vector<16x1xf32> to vector<2x8x1xf32>
    %c0_12 = arith.constant 0 : index
    %c0_13 = arith.constant 0 : index
    %c0_14 = arith.constant 0 : index
    %15 = vector.load %arg2[%c0_12, %c0_13, %c0_14] : memref<2x8x1xi32, #tpu.memory_space<vmem>>, vector<2x8x1xi32>
    %c0_i32 = arith.constant 0 : i32
    %16 = vector.broadcast %c0_i32 : i32 to vector<2x8x1xi32>
    %17 = arith.cmpi ne, %15, %16 : vector<2x8x1xi32>
    %cst_15 = arith.constant -6.550400e+04 : f32
    %18 = vector.broadcast %cst_15 : f32 to vector<2x8x1xf32>
    %19 = arith.select %17, %18, %14 : vector<2x8x1xi1>, vector<2x8x1xf32>
    %cst_16 = arith.constant dense<0xFF800000> : vector<2x1xf32>
    %20 = vector.multi_reduction <maximumf>, %19, %cst_16 [1] : vector<2x8x1xf32> to vector<2x1xf32>
    %21 = vector.shape_cast %20 : vector<2x1xf32> to vector<2x1x1xf32>
    %22 = vector.broadcast %21 : vector<2x1x1xf32> to vector<2x8x1xf32>
    %23 = arith.subf %19, %22 : vector<2x8x1xf32>
    %24 = math.exp %23 : vector<2x8x1xf32>
    %cst_17 = arith.constant dense<0.000000e+00> : vector<2x1xf32>
    %25 = vector.multi_reduction <add>, %24, %cst_17 [1] : vector<2x8x1xf32> to vector<2x1xf32>
    %26 = vector.shape_cast %25 : vector<2x1xf32> to vector<2x1x1xf32>
    %27 = tpu.reciprocal %26 {approx = true} : vector<2x1x1xf32> -> vector<2x1x1xf32>
    %28 = vector.broadcast %27 : vector<2x1x1xf32> to vector<2x8x1xf32>
    %29 = arith.mulf %24, %28 : vector<2x8x1xf32>
    %30 = vector.broadcast %29 : vector<2x8x1xf32> to vector<2x8x32xf32>
    %31 = arith.mulf %30, %0 : vector<2x8x32xf32>
    %cst_18 = arith.constant dense<0.000000e+00> : vector<2x32xf32>
    %32 = vector.multi_reduction <add>, %31, %cst_18 [1] : vector<2x8x32xf32> to vector<2x32xf32>
    %c0_19 = arith.constant 0 : index
    %c0_20 = arith.constant 0 : index
    %33 = vector.load %arg7[%c0_19, %c0_20] : memref<32x32xf32, #tpu.memory_space<vmem>>, vector<32x32xf32>
    %cst_21 = arith.constant dense<0.000000e+00> : vector<2x32xf32>
    %34 = tpu.matmul %32, %33, %cst_21 {dimension_numbers = #tpu.dot_dimension_numbers<[1], [0], [0], [1], [0, 0, 1, 1], [], []>} : vector<2x32xf32>, vector<32x32xf32>, vector<2x32xf32> -> vector<2x32xf32>
    %c0_22 = arith.constant 0 : index
    %c0_23 = arith.constant 0 : index
    %35 = vector.load %arg8[%c0_22, %c0_23] : memref<1x32xf32, #tpu.memory_space<vmem>>, vector<1x32xf32>
    %36 = vector.broadcast %35 : vector<1x32xf32> to vector<2x32xf32>
    %37 = arith.addf %34, %36 : vector<2x32xf32>
    %c0_24 = arith.constant 0 : index
    %c0_25 = arith.constant 0 : index
    %38 = vector.load %arg9[%c0_24, %c0_25] : memref<2x32xf32, #tpu.memory_space<vmem>>, vector<2x32xf32>
    tpu.vector_store %arg9[%c0_24, %c0_25], %37 {strides = array<i32>} : memref<2x32xf32, #tpu.memory_space<vmem>>, vector<2x32xf32>,
    return
  }
  func.func @transform_0(%arg0: i32) -> (i32, i32, i32) {
    %c0_i32 = arith.constant 0 : i32
    %c0_i32_0 = arith.constant 0 : i32
    %c0_i32_1 = arith.constant 0 : i32
    return %arg0, %c0_i32, %c0_i32_0 : i32, i32, i32
  }
  func.func @transform_1(%arg0: i32) -> (i32, i32, i32) {
    %c0_i32 = arith.constant 0 : i32
    %c0_i32_0 = arith.constant 0 : i32
    %c0_i32_1 = arith.constant 0 : i32
    return %arg0, %c0_i32, %c0_i32_0 : i32, i32, i32
  }
  func.func @transform_2(%arg0: i32) -> (i32, i32) {
    %c0_i32 = arith.constant 0 : i32
    %c0_i32_0 = arith.constant 0 : i32
    %c0_i32_1 = arith.constant 0 : i32
    return %c0_i32, %c0_i32_0 : i32, i32
  }
  func.func @transform_3(%arg0: i32) -> (i32, i32) {
    %c0_i32 = arith.constant 0 : i32
    %c0_i32_0 = arith.constant 0 : i32
    %c0_i32_1 = arith.constant 0 : i32
    return %c0_i32, %c0_i32_0 : i32, i32
  }
  func.func @transform_4(%arg0: i32) -> (i32, i32) {
    %c0_i32 = arith.constant 0 : i32
    %c0_i32_0 = arith.constant 0 : i32
    %c0_i32_1 = arith.constant 0 : i32
    return %c0_i32, %c0_i32_0 : i32, i32
  }
  func.func @transform_5(%arg0: i32) -> (i32, i32) {
    %c0_i32 = arith.constant 0 : i32
    %c0_i32_0 = arith.constant 0 : i32
    %c0_i32_1 = arith.constant 0 : i32
    return %c0_i32, %c0_i32_0 : i32, i32
  }
  func.func @transform_6(%arg0: i32) -> (i32, i32) {
    %c0_i32 = arith.constant 0 : i32
    %c0_i32_0 = arith.constant 0 : i32
    %c0_i32_1 = arith.constant 0 : i32
    return %c0_i32, %c0_i32_0 : i32, i32
  }
  func.func @transform_7(%arg0: i32) -> (i32, i32) {
    %c0_i32 = arith.constant 0 : i32
    %c0_i32_0 = arith.constant 0 : i32
    %c0_i32_1 = arith.constant 0 : i32
    return %c0_i32, %c0_i32_0 : i32, i32
  }
  func.func @transform_8(%arg0: i32) -> (i32, i32) {
    %c0_i32 = arith.constant 0 : i32
    %c0_i32_0 = arith.constant 0 : i32
    return %arg0, %c0_i32 : i32, i32
  }
}

module attributes {stable_mosaic.version = 11 : i64} {
  func.func @attflat_kernel(%arg0: i32, %arg1: memref<2x8x32xf32, #tpu.memory_space<vmem>>, %arg2: memref<2x8x1xi32, #tpu.memory_space<vmem>>, %arg3: memref<32x64xf32, #tpu.memory_space<vmem>>, %arg4: memref<1x64xf32, #tpu.memory_space<vmem>>, %arg5: memref<64x1xf32, #tpu.memory_space<vmem>>, %arg6: memref<1x1xf32, #tpu.memory_space<vmem>>, %arg7: memref<32x32xf32, #tpu.memory_space<vmem>>, %arg8: memref<1x32xf32, #tpu.memory_space<vmem>>, %arg9: memref<2x32xf32, #tpu.memory_space<vmem>>) attributes {dimension_semantics = [#tpu.dimension_semantics<parallel>], iteration_bounds = array<i64: 1>, scalar_prefetch = 0 : i64, scratch_operands = 0 : i64, tpu.core_type = #tpu.core_type<tc>, window_params = [{transform_indices = @transform_0, window_bounds = array<i64: 2, 8, 32>}, {transform_indices = @transform_1, window_bounds = array<i64: 2, 8, 1>}, {pipeline_mode = #tpu.pipeline_mode<synchronous>, transform_indices = @transform_2, window_bounds = array<i64: 32, 64>}, {pipeline_mode = #tpu.pipeline_mode<synchronous>, transform_indices = @transform_3, window_bounds = array<i64: 1, 64>}, {pipeline_mode = #tpu.pipeline_mode<synchronous>, transform_indices = @transform_4, window_bounds = array<i64: 64, 1>}, {pipeline_mode = #tpu.pipeline_mode<synchronous>, transform_indices = @transform_5, window_bounds = array<i64: 1, 1>}, {pipeline_mode = #tpu.pipeline_mode<synchronous>, transform_indices = @transform_6, window_bounds = array<i64: 32, 32>}, {pipeline_mode = #tpu.pipeline_mode<synchronous>, transform_indices = @transform_7, window_bounds = array<i64: 1, 32>}, {transform_indices = @transform_8, window_bounds = array<i64: 2, 32>}]} {
    %c0 = arith.constant 0 : index
    %c0_0 = arith.constant 0 : index
    %c0_1 = arith.constant 0 : index
    %0 = vector.load %arg1[%c0, %c0_0, %c0_1] : memref<2x8x32xf32, #tpu.memory_space<vmem>>, vector<2x8x32xf32>
    %1 = vector.shape_cast %0 : vector<2x8x32xf32> to vector<16x32xf32>
    %c0_2 = arith.constant 0 : index
    %c0_3 = arith.constant 0 : index
    %2 = vector.load %arg3[%c0_2, %c0_3] : memref<32x64xf32, #tpu.memory_space<vmem>>, vector<32x64xf32>
    %cst = arith.constant dense<0.000000e+00> : vector<16x64xf32>
    %3 = tpu.matmul %1, %2, %cst {dimension_numbers = #tpu.dot_dimension_numbers<[1], [0], [0], [1], [0, 0, 1, 1], [], []>} : vector<16x32xf32>, vector<32x64xf32>, vector<16x64xf32> -> vector<16x64xf32>
    %c0_4 = arith.constant 0 : index
    %c0_5 = arith.constant 0 : index
    %4 = vector.load %arg4[%c0_4, %c0_5] : memref<1x64xf32, #tpu.memory_space<vmem>>, vector<1x64xf32>
    %5 = vector.broadcast %4 : vector<1x64xf32> to vector<16x64xf32>
    %6 = arith.addf %3, %5 : vector<16x64xf32>
    %cst_6 = arith.constant 0.000000e+00 : f32
    %7 = vector.broadcast %cst_6 : f32 to vector<16x64xf32>
    %8 = arith.maximumf %6, %7 : vector<16x64xf32>
    %c0_7 = arith.constant 0 : index
    %c0_8 = arith.constant 0 : index
    %9 = vector.load %arg5[%c0_7, %c0_8] : memref<64x1xf32, #tpu.memory_space<vmem>>, vector<64x1xf32>
    %cst_9 = arith.constant dense<0.000000e+00> : vector<16x1xf32>
    %10 = tpu.matmul %8, %9, %cst_9 {dimension_numbers = #tpu.dot_dimension_numbers<[1], [0], [0], [1], [0, 0, 1, 1], [], []>} : vector<16x64xf32>, vector<64x1xf32>, vector<16x1xf32> -> vector<16x1xf32>
    %c0_10 = arith.constant 0 : index
    %c0_11 = arith.constant 0 : index
    %11 = vector.load %arg6[%c0_10, %c0_11] : memref<1x1xf32, #tpu.memory_space<vmem>>, vector<1x1xf32>
    %12 = vector.broadcast %11 : vector<1x1xf32> to vector<16x1xf32>
    %13 = arith.addf %10, %12 : vector<16x1xf32>
    %14 = vector.shape_cast %13 : vector<16x1xf32> to vector<2x8x1xf32>
    %c0_12 = arith.constant 0 : index
    %c0_13 = arith.constant 0 : index
    %c0_14 = arith.constant 0 : index
    %15 = vector.load %arg2[%c0_12, %c0_13, %c0_14] : memref<2x8x1xi32, #tpu.memory_space<vmem>>, vector<2x8x1xi32>
    %c0_i32 = arith.constant 0 : i32
    %16 = vector.broadcast %c0_i32 : i32 to vector<2x8x1xi32>
    %17 = arith.cmpi ne, %15, %16 : vector<2x8x1xi32>
    %cst_15 = arith.constant -6.550400e+04 : f32
    %18 = vector.broadcast %cst_15 : f32 to vector<2x8x1xf32>
    %19 = arith.select %17, %18, %14 : vector<2x8x1xi1>, vector<2x8x1xf32>
    %cst_16 = arith.constant dense<0xFF800000> : vector<2x1xf32>
    %20 = vector.multi_reduction <maximumf>, %19, %cst_16 [1] : vector<2x8x1xf32> to vector<2x1xf32>
    %21 = vector.shape_cast %20 : vector<2x1xf32> to vector<2x1x1xf32>
    %22 = vector.broadcast %21 : vector<2x1x1xf32> to vector<2x8x1xf32>
    %23 = arith.subf %19, %22 : vector<2x8x1xf32>
    %24 = math.exp %23 : vector<2x8x1xf32>
    %cst_17 = arith.constant dense<0.000000e+00> : vector<2x1xf32>
    %25 = vector.multi_reduction <add>, %24, %cst_17 [1] : vector<2x8x1xf32> to vector<2x1xf32>
    %26 = vector.shape_cast %25 : vector<2x1xf32> to vector<2x1x1xf32>
    %27 = tpu.reciprocal %26 {approx = true} : vector<2x1x1xf32> -> vector<2x1x1xf32>
    %28 = vector.broadcast %27 : vector<2x1x1xf32> to vector<2x8x1xf32>
    %29 = arith.mulf %24, %28 : vector<2x8x1xf32>
    %30 = vector.broadcast %29 : vector<2x8x1xf32> to vector<2x8x32xf32>
    %31 = arith.mulf %30, %0 : vector<2x8x32xf32>
    %cst_18 = arith.constant dense<0.000000e+00> : vector<2x32xf32>
    %32 = vector.multi_reduction <add>, %31, %cst_18 [1] : vector<2x8x32xf32> to vector<2x32xf32>
    %c0_19 = arith.constant 0 : index
    %c0_20 = arith.constant 0 : index
    %33 = vector.load %arg7[%c0_19, %c0_20] : memref<32x32xf32, #tpu.memory_space<vmem>>, vector<32x32xf32>
    %cst_21 = arith.constant dense<0.000000e+00> : vector<2x32xf32>
    %34 = tpu.matmul %32, %33, %cst_21 {dimension_numbers = #tpu.dot_dimension_numbers<[1], [0], [0], [1], [0, 0, 1, 1], [], []>} : vector<2x32xf32>, vector<32x32xf32>, vector<2x32xf32> -> vector<2x32xf32>
    %c0_22 = arith.constant 0 : index
    %c0_23 = arith.constant 0 : index
    %35 = vector.load %arg8[%c0_22, %c0_23] : memref<1x32xf32, #tpu.memory_space<vmem>>, vector<1x32xf32>
    %36 = vector.broadcast %35 : vector<1x32xf32> to vector<2x32xf32>
    %37 = arith.addf %34, %36 : vector<2x32xf32>
    %c0_24 = arith.constant 0 : index
    %c0_25 = arith.constant 0 : index
    %38 = vector.load %arg9[%c0_24, %c0_25] : memref<2x32xf32, #tpu.memory_space<vmem>>, vector<2x32xf32>
    tpu.vector_store %arg9[%c0_24, %c0_25], %37 {strides = array<i32>} : memref<2x32xf32, #tpu.memory_space<vmem>>, vector<2x32xf32>,
    return
  }
  func.func @transform_0(%arg0: i32) -> (i32, i32, i32) {
    %c0_i32 = arith.constant 0 : i32
    %c0_i32_0 = arith.constant 0 : i32
    %c0_i32_1 = arith.constant 0 : i32
    return %arg0, %c0_i32, %c0_i32_0 : i32, i32, i32
  }
  func.func @transform_1(%arg0: i32) -> (i32, i32, i32) {
    %c0_i32 = arith.constant 0 : i32
    %c0_i32_0 = arith.constant 0 : i32
    %c0_i32_1 = arith.constant 0 : i32
    return %arg0, %c0_i32, %c0_i32_0 : i32, i32, i32
  }
  func.func @transform_2(%arg0: i32) -> (i32, i32) {
    %c0_i32 = arith.constant 0 : i32
    %c0_i32_0 = arith.constant 0 : i32
    %c0_i32_1 = arith.constant 0 : i32
    return %c0_i32, %c0_i32_0 : i32, i32
  }
  func.func @transform_3(%arg0: i32) -> (i32, i32) {
    %c0_i32 = arith.constant 0 : i32
    %c0_i32_0 = arith.constant 0 : i32
    %c0_i32_1 = arith.constant 0 : i32
    return %c0_i32, %c0_i32_0 : i32, i32
  }
  func.func @transform_4(%arg0: i32) -> (i32, i32) {
    %c0_i32 = arith.constant 0 : i32
    %c0_i32_0 = arith.constant 0 : i32
    %c0_i32_1 = arith.constant 0 : i32
    return %c0_i32, %c0_i32_0 : i32, i32
  }
  func.func @transform_5(%arg0: i32) -> (i32, i32) {
    %c0_i32 = arith.constant 0 : i32
    %c0_i32_0 = arith.constant 0 : i32
    %c0_i32_1 = arith.constant 0 : i32
    return %c0_i32, %c0_i32_0 : i32, i32
  }
  func.func @transform_6(%arg0: i32) -> (i32, i32) {
    %c0_i32 = arith.constant 0 : i32
    %c0_i32_0 = arith.constant 0 : i32
    %c0_i32_1 = arith.constant 0 : i32
    return %c0_i32, %c0_i32_0 : i32, i32
  }
  func.func @transform_7(%arg0: i32) -> (i32, i32) {
    %c0_i32 = arith.constant 0 : i32
    %c0_i32_0 = arith.constant 0 : i32
    %c0_i32_1 = arith.constant 0 : i32
    return %c0_i32, %c0_i32_0 : i32, i32
  }
  func.func @transform_8(%arg0: i32) -> (i32, i32) {
    %c0_i32 = arith.constant 0 : i32
    %c0_i32_0 = arith.constant 0 : i32
    return %arg0, %c0_i32 : i32, i32
  }
}

</mosaic_0001>

<llo_original>
// kernel: tpu_custom_call.1
$region0: #{tpu_custom_call.1}
  #allocation0 [shape = 'u32[]', space=smem, size = 0x4, offset = 0x4, fixed_abs, tag = 'smem constant byte address 0x4 - core index']
  #allocation1 [shape = 'u32[72,128]{1,0:T(1,128)}', space=vmem, size = 0x9000, scoped, tag = 'internal scratch']
  #allocation2 [shape = 'f32[1,1]{1,0:T(1,128)S(1)}', space=vmem, size = 0x200, scoped, tag = 'scoped memory for tpu_custom_call.1']
  %s0 = inlined_call_operand.vmem [shape: f32[2,8,32], index: 0, kind: input, shape index: {}]
  %s1 = inlined_call_operand.vmem [shape: s32[2,8,1], index: 1, kind: input, shape index: {}]
  %s2 = inlined_call_operand.vmem [shape: f32[32,64], index: 2, kind: input, shape index: {}]
  %s3 = inlined_call_operand.vmem [shape: f32[1,64], index: 3, kind: input, shape index: {}]
  %s4 = inlined_call_operand.vmem [shape: f32[64,1], index: 4, kind: input, shape index: {}]
  %s5 = inlined_call_operand.<no memory space> [shape: f32[1,1], index: 5, kind: input, shape index: {}]
  %s6 = inlined_call_operand.vmem [shape: f32[32,32], index: 6, kind: input, shape index: {}]
  %s7 = inlined_call_operand.vmem [shape: f32[1,32], index: 7, kind: input, shape index: {}]
  %s8 = inlined_call_operand.hbm [shape: f32[2,32], index: 8, kind: output, shape index: {}]
  %s9 = sld [smem:[#allocation0]]
  $region42: #{tpu_custom_call.1} parent=0
    _
  %s11 = ssub.s32 1, %s9
  %s12 = scalar_select 0, %s11, %s9
  %v13 = vstv %s5
  %14 = vst [vmem:[#allocation2] sm:$0x1] %v13
  $region1: #{tpu_custom_call.1} parent=0
    #allocation3 [shape = 'u8[1024]{0}', space=vmem, size = 0x400, scoped, tag = 'output window, operand 0, single buffered']
    #allocation4 [shape = 's32[1]{0}', space=sflag, size = 0x4, scoped, tag = 'scoped memory for tpu_custom_call.1']
    %15 = vsyncpa [#allocation4], 0
    // Predicated region
    $region2: #{tpu_custom_call.1} parent=1 // pred_check
      _
    $region3: #{tpu_custom_call.1} parent=1 // pred_check_branch
      %17 = sbr.rel (0) target = $region5
    $region4: #{tpu_custom_call.1} parent=1 // pred_region
      _
    $region5: #{tpu_custom_call.1} parent=1 // pred_fallthru
      _
    // Predicated region
    $region6: #{tpu_custom_call.1} parent=1 // pred_check
      _
    $region7: #{tpu_custom_call.1} parent=1 // pred_check_branch
      %19 = sbr.rel (0) target = $region9
    $region8: #{tpu_custom_call.1} parent=1 // pred_region
      _
    $region9: #{tpu_custom_call.1} parent=1 // pred_fallthru
      _
    // Predicated region
    $region10: #{tpu_custom_call.1} parent=1 // pred_check
      _
    $region11: #{tpu_custom_call.1} parent=1 // pred_check_branch
      %21 = sbr.rel (0) target = $region13
    $region12: #{tpu_custom_call.1} parent=1 // pred_region
      _
    $region13: #{tpu_custom_call.1} parent=1 // pred_fallthru
      _
    // Predicated region
    $region14: #{tpu_custom_call.1} parent=1 // pred_check
      _
    $region15: #{tpu_custom_call.1} parent=1 // pred_check_branch
      %23 = sbr.rel (0) target = $region17
    $region16: #{tpu_custom_call.1} parent=1 // pred_region
      _
    $region17: #{tpu_custom_call.1} parent=1 // pred_fallthru
      _
    // Predicated region
    $region18: #{tpu_custom_call.1} parent=1 // pred_check
      _
    $region19: #{tpu_custom_call.1} parent=1 // pred_check_branch
      %25 = sbr.rel (0) target = $region21
    $region20: #{tpu_custom_call.1} parent=1 // pred_region
      _
    $region21: #{tpu_custom_call.1} parent=1 // pred_fallthru
      _
    // Predicated region
    $region22: #{tpu_custom_call.1} parent=1 // pred_check
      _
    $region23: #{tpu_custom_call.1} parent=1 // pred_check_branch
      %27 = sbr.rel (0) target = $region25
    $region24: #{tpu_custom_call.1} parent=1 // pred_region
      _
    $region25: #{tpu_custom_call.1} parent=1 // pred_fallthru
      _
    // Predicated region
    $region26: #{tpu_custom_call.1} parent=1 // pred_check
      _
    $region27: #{tpu_custom_call.1} parent=1 // pred_check_branch
      %29 = sbr.rel (0) target = $region29
    $region28: #{tpu_custom_call.1} parent=1 // pred_region
      _
    $region29: #{tpu_custom_call.1} parent=1 // pred_fallthru
      _
    // Predicated region
    $region30: #{tpu_custom_call.1} parent=1 // pred_check
      _
    $region31: #{tpu_custom_call.1} parent=1 // pred_check_branch
      %31 = sbr.rel (0) target = $region33
    $region32: #{tpu_custom_call.1} parent=1 // pred_region
      _
    $region33: #{tpu_custom_call.1} parent=1 // pred_fallthru
      _
    %v32 = vld [vmem:[%s0] sm:$0xff]
    %v33 = vld [vmem:[%s0 + $0x8] sm:$0xff]
    %v34 = vld [vmem:[%s2] sm:$0xff]
    %v35 = vld [vmem:[%s2 + $0x8] sm:$0xff]
    %v36 = vld [vmem:[%s2 + $0x10] sm:$0xff]
    %v37 = vld [vmem:[%s2 + $0x18] sm:$0xff]
    %v38 = vld [vmem:[%s3] sm:$0x1]
    %v40 = vperm.slane %v38, 0
    %vm42 = vcmask 261120
    %v44 = vsel %vm42, %v32, 0
    %v47 = vsel %vm42, %v33, 0
    %49 = vmatpush.msra.mxu0 0.0
    %50 = vmatpush.msra.mxu0 0.0
    %51 = vmatpush.msra.mxu0 0.0
    %52 = vmatpush.msra.mxu0 0.0
    %53 = vmatpush.msra.mxu0 0.0
    %54 = vmatpush.msra.mxu0 0.0
    %55 = vmatpush.msra.mxu0 0.0
    %56 = vmatpush.msra.mxu0 0.0
    %57 = vmatpush.msra.mxu0 0.0
    %58 = vmatpush.msra.mxu0 0.0
    %59 = vmatpush.msra.mxu0 0.0
    %60 = vmatpush.msra.mxu0 0.0
    %61 = vmatpush.msra.mxu0 %v37
    %62 = vmatpush.msra.mxu0 %v36
    %63 = vmatpush.msra.mxu0 %v35
    %64 = vmatpush.msra.mxu0 %v34
    %65 = vmatmul.f32.gmra.mxu0 %v44
    %v66 = vpop.f32.mrf.mxu0
    %v67 = vadd.f32 %v40, %v66
    %68 = vmatmul.f32.gmra.mxu0 %v47
    %v69 = vpop.f32.mrf.mxu0
    %v70 = vadd.f32 %v40, %v69
    %71 = vdwg.mxu0
    %v72 = vmax.f32 %v67, 0.0
    %v73 = vmax.f32 %v70, 0.0
    %v74 = vld [vmem:[%s4] sm:$0xff]
    %v75 = vld [vmem:[%s4 + $0x8] sm:$0xff]
    %v76 = vld [vmem:[%s4 + $0x10] sm:$0xff]
    %v77 = vld [vmem:[%s4 + $0x18] sm:$0xff]
    %v78 = vld [vmem:[%s4 + $0x20] sm:$0xff]
    %v79 = vld [vmem:[%s4 + $0x28] sm:$0xff]
    %v80 = vld [vmem:[%s4 + $0x30] sm:$0xff]
    %v81 = vld [vmem:[%s4 + $0x38] sm:$0xff]
    %v82 = vld [vmem:[#allocation2] sm:$0x1]
    %v84 = vperm.slane %v82, 0
    %vm86 = vcmask 523264
    %v88 = vsel %vm86, %v72, 0
    %v91 = vsel %vm86, %v73, 0
    %93 = vmatpush.msra.mxu0 0.0
    %94 = vmatpush.msra.mxu0 0.0
    %95 = vmatpush.msra.mxu0 0.0
    %96 = vmatpush.msra.mxu0 0.0
    %97 = vmatpush.msra.mxu0 0.0
    %98 = vmatpush.msra.mxu0 0.0
    %99 = vmatpush.msra.mxu0 0.0
    %100 = vmatpush.msra.mxu0 0.0
    %101 = vmatpush.msra.mxu0 %v81
    %102 = vmatpush.msra.mxu0 %v80
    %103 = vmatpush.msra.mxu0 %v79
    %104 = vmatpush.msra.mxu0 %v78
    %105 = vmatpush.msra.mxu0 %v77
    %106 = vmatpush.msra.mxu0 %v76
    %107 = vmatpush.msra.mxu0 %v75
    %108 = vmatpush.msra.mxu0 %v74
    %109 = vmatmul.f32.gmra.mxu0 %v88
    %v110 = vpop.f32.mrf.mxu0
    %v111 = vadd.f32 %v84, %v110
    %112 = vmatmul.f32.gmra.mxu0 %v91
    %v113 = vpop.f32.mrf.mxu0
    %v114 = vadd.f32 %v84, %v113
    %115 = vdwg.mxu0
    %v116 = vld [vmem:[%s1] sm:$0xff]
    %v117 = vld [vmem:[%s1 + $0x8] sm:$0xff]
    %vm118 = vcmp.ne.s32.totalorder %v116, 0
    %vm119 = vcmp.ne.s32.totalorder %v117, 0
    %v120 = vsel %vm118, -65504.0, %v111
    %v121 = vsel %vm119, -65504.0, %v114
    %vm122 = vcmask 7168
    %v123 = vsel %vm122, %v120, -inf
    %v124 = vrot.slane %v123, 4
    %v125 = vmax.f32 %v123, %v124
    %v126 = vrot.slane %v125, 2
    %v127 = vmax.f32 %v125, %v126
    %v128 = vrot.slane %v127, 1
    %v129 = vmax.f32 %v127, %v128
    %v130 = vsel %vm122, %v121, -inf
    %v131 = vrot.slane %v130, 4
    %v132 = vmax.f32 %v130, %v131
    %v133 = vrot.slane %v132, 2
    %v134 = vmax.f32 %v132, %v133
    %v135 = vrot.slane %v134, 1
    %v136 = vmax.f32 %v134, %v135
    %v137 = vsub.f32 %v120, %v129
    %v138 = vsub.f32 %v121, %v136
    %v139 = vmul.f32 %v137, 1.442695
    %v140 = vpow.pop %v139
    %v141 = vmul.f32 %v138, 1.442695
    %v142 = vpow.pop %v141
    %v143 = vsel %vm122, %v140, 0.0
    %v144 = vrot.slane %v143, 4
    %v145 = vadd.f32 %v143, %v144
    %v146 = vrot.slane %v145, 2
    %v147 = vadd.f32 %v145, %v146
    %v148 = vrot.slane %v147, 1
    %v149 = vadd.f32 %v147, %v148
    %v150 = vsel %vm122, %v142, 0.0
    %v151 = vrot.slane %v150, 4
    %v152 = vadd.f32 %v150, %v151
    %v153 = vrot.slane %v152, 2
    %v154 = vadd.f32 %v152, %v153
    %v155 = vrot.slane %v154, 1
    %v156 = vadd.f32 %v154, %v155
    %v157 = vrcp.pop %v149
    %v158 = vrcp.pop %v156
    %v159 = vmul.f32 %v140, %v157
    %v160 = vmul.f32 %v142, %v158
    %162 = vset.pattern.permute.xlu0 0
    %163 = vperm.xlu0 %162, %v159
    %v164 = vpop.permute.xlu0 %163
    %167 = vset.pattern.permute.xlu0 0
    %168 = vperm.xlu0 %167, %v160
    %v169 = vpop.permute.xlu0 %168
    %v171 = vmul.f32 %v164, %v32
    %v172 = vmul.f32 %v169, %v33
    %v173 = vsel %vm42, %v171, 0.0
    %v174 = vrot.slane %v173, 4
    %v175 = vadd.f32 %v173, %v174
    %v176 = vrot.slane %v175, 2
    %v177 = vadd.f32 %v175, %v176
    %v178 = vrot.slane %v177, 1
    %v179 = vadd.f32 %v177, %v178
    %v180 = vsel %vm42, %v172, 0.0
    %v181 = vrot.slane %v180, 4
    %v182 = vadd.f32 %v180, %v181
    %v183 = vrot.slane %v182, 2
    %v184 = vadd.f32 %v182, %v183
    %v185 = vrot.slane %v184, 1
    %v186 = vadd.f32 %v184, %v185
    %v187 = vld [vmem:[%s6] sm:$0xff]
    %v188 = vld [vmem:[%s6 + $0x8] sm:$0xff]
    %v189 = vld [vmem:[%s6 + $0x10] sm:$0xff]
    %v190 = vld [vmem:[%s6 + $0x18] sm:$0xff]
    %v191 = vld [vmem:[%s7] sm:$0x1]
    %v193 = vperm.slane %v191, 0
    %vm197 = vcmask 1041409
    %v198 = vsel %vm197, %v186, %v179
    %v199 = vsel %vm42, %v198, 0
    %201 = vmatpush.msra.mxu0 0.0
    %202 = vmatpush.msra.mxu0 0.0
    %203 = vmatpush.msra.mxu0 0.0
    %204 = vmatpush.msra.mxu0 0.0
    %205 = vmatpush.msra.mxu0 0.0
    %206 = vmatpush.msra.mxu0 0.0
    %207 = vmatpush.msra.mxu0 0.0
    %208 = vmatpush.msra.mxu0 0.0
    %209 = vmatpush.msra.mxu0 0.0
    %210 = vmatpush.msra.mxu0 0.0
    %211 = vmatpush.msra.mxu0 0.0
    %212 = vmatpush.msra.mxu0 0.0
    %213 = vmatpush.msra.mxu0 %v190
    %214 = vmatpush.msra.mxu0 %v189
    %215 = vmatpush.msra.mxu0 %v188
    %216 = vmatpush.msra.mxu0 %v187
    %217 = vmatmul.f32.gmra.mxu0 %v199
    %v218 = vpop.f32.mrf.mxu0
    %v219 = vadd.f32 %v193, %v218
    %220 = vdwg.mxu0
    %vm221 = vcmask 254976
    %222 = vst.msk [vmem:[#allocation3] sm:$0x3] %vm221, %v219
    // Predicated region
    $region34: #{tpu_custom_call.1} parent=1 // pred_check
      _
    $region35: #{tpu_custom_call.1} parent=1 // pred_check_branch
      %224 = sbr.rel (0) target = $region37
    $region36: #{tpu_custom_call.1} parent=1 // pred_region
      %226 = vsyncadd [#allocation4], 0
      %s228 = sshll.u32 [#allocation3], 4
      %s229 = int_to_ptr.vmem [resolvable:$true] %s228
      %s230 = sshll.u32 %s8, 4
      %s231 = int_to_ptr.hbm [resolvable:$true] %s230
      %233 = dma.vmem_to_hbm [thread:$0]  %s229, 32, %s231, [#allocation4]
    $region37: #{tpu_custom_call.1} parent=1 // pred_fallthru
      _
    // Predicated region
    $region38: #{tpu_custom_call.1} parent=1 // pred_check
      _
    $region39: #{tpu_custom_call.1} parent=1 // pred_check_branch
      %235 = sbr.rel (0) target = $region41
    $region40: #{tpu_custom_call.1} parent=1 // pred_region
      %237 = dma.done [#allocation4], 32
    $region41: #{tpu_custom_call.1} parent=1 // pred_fallthru
      _
    %238 = vsyncpa [#allocation4], 1

// kernel: tpu_custom_call.1
$region0: #{tpu_custom_call.1}
  #allocation0 [shape = 'u32[]', space=smem, size = 0x4, offset = 0x4, fixed_abs, tag = 'smem constant byte address 0x4 - core index']
  #allocation1 [shape = 'u32[72,128]{1,0:T(1,128)}', space=vmem, size = 0x9000, scoped, tag = 'internal scratch']
  #allocation2 [shape = 'f32[1,1]{1,0:T(1,128)S(1)}', space=vmem, size = 0x200, scoped, tag = 'scoped memory for tpu_custom_call.1']
  %s0 = inlined_call_operand.vmem [shape: f32[2,8,32], index: 0, kind: input, shape index: {}]
  %s1 = inlined_call_operand.vmem [shape: s32[2,8,1], index: 1, kind: input, shape index: {}]
  %s2 = inlined_call_operand.vmem [shape: f32[32,64], index: 2, kind: input, shape index: {}]
  %s3 = inlined_call_operand.vmem [shape: f32[1,64], index: 3, kind: input, shape index: {}]
  %s4 = inlined_call_operand.vmem [shape: f32[64,1], index: 4, kind: input, shape index: {}]
  %s5 = inlined_call_operand.<no memory space> [shape: f32[1,1], index: 5, kind: input, shape index: {}]
  %s6 = inlined_call_operand.vmem [shape: f32[32,32], index: 6, kind: input, shape index: {}]
  %s7 = inlined_call_operand.vmem [shape: f32[1,32], index: 7, kind: input, shape index: {}]
  %s8 = inlined_call_operand.hbm [shape: f32[2,32], index: 8, kind: output, shape index: {}]
  %s9 = sld [smem:[#allocation0]]
  $region42: #{tpu_custom_call.1} parent=0
    _
  %s11 = ssub.s32 1, %s9
  %s12 = scalar_select 0, %s11, %s9
  %v13 = vstv %s5
  %14 = vst [vmem:[#allocation2] sm:$0x1] %v13
  $region1: #{tpu_custom_call.1} parent=0
    #allocation3 [shape = 'u8[1024]{0}', space=vmem, size = 0x400, scoped, tag = 'output window, operand 0, single buffered']
    #allocation4 [shape = 's32[1]{0}', space=sflag, size = 0x4, scoped, tag = 'scoped memory for tpu_custom_call.1']
    %15 = vsyncpa [#allocation4], 0
    // Predicated region
    $region2: #{tpu_custom_call.1} parent=1 // pred_check
      _
    $region3: #{tpu_custom_call.1} parent=1 // pred_check_branch
      %17 = sbr.rel (0) target = $region5
    $region4: #{tpu_custom_call.1} parent=1 // pred_region
      _
    $region5: #{tpu_custom_call.1} parent=1 // pred_fallthru
      _
    // Predicated region
    $region6: #{tpu_custom_call.1} parent=1 // pred_check
      _
    $region7: #{tpu_custom_call.1} parent=1 // pred_check_branch
      %19 = sbr.rel (0) target = $region9
    $region8: #{tpu_custom_call.1} parent=1 // pred_region
      _
    $region9: #{tpu_custom_call.1} parent=1 // pred_fallthru
      _
    // Predicated region
    $region10: #{tpu_custom_call.1} parent=1 // pred_check
      _
    $region11: #{tpu_custom_call.1} parent=1 // pred_check_branch
      %21 = sbr.rel (0) target = $region13
    $region12: #{tpu_custom_call.1} parent=1 // pred_region
      _
    $region13: #{tpu_custom_call.1} parent=1 // pred_fallthru
      _
    // Predicated region
    $region14: #{tpu_custom_call.1} parent=1 // pred_check
      _
    $region15: #{tpu_custom_call.1} parent=1 // pred_check_branch
      %23 = sbr.rel (0) target = $region17
    $region16: #{tpu_custom_call.1} parent=1 // pred_region
      _
    $region17: #{tpu_custom_call.1} parent=1 // pred_fallthru
      _
    // Predicated region
    $region18: #{tpu_custom_call.1} parent=1 // pred_check
      _
    $region19: #{tpu_custom_call.1} parent=1 // pred_check_branch
      %25 = sbr.rel (0) target = $region21
    $region20: #{tpu_custom_call.1} parent=1 // pred_region
      _
    $region21: #{tpu_custom_call.1} parent=1 // pred_fallthru
      _
    // Predicated region
    $region22: #{tpu_custom_call.1} parent=1 // pred_check
      _
    $region23: #{tpu_custom_call.1} parent=1 // pred_check_branch
      %27 = sbr.rel (0) target = $region25
    $region24: #{tpu_custom_call.1} parent=1 // pred_region
      _
    $region25: #{tpu_custom_call.1} parent=1 // pred_fallthru
      _
    // Predicated region
    $region26: #{tpu_custom_call.1} parent=1 // pred_check
      _
    $region27: #{tpu_custom_call.1} parent=1 // pred_check_branch
      %29 = sbr.rel (0) target = $region29
    $region28: #{tpu_custom_call.1} parent=1 // pred_region
      _
    $region29: #{tpu_custom_call.1} parent=1 // pred_fallthru
      _
    // Predicated region
    $region30: #{tpu_custom_call.1} parent=1 // pred_check
      _
    $region31: #{tpu_custom_call.1} parent=1 // pred_check_branch
      %31 = sbr.rel (0) target = $region33
    $region32: #{tpu_custom_call.1} parent=1 // pred_region
      _
    $region33: #{tpu_custom_call.1} parent=1 // pred_fallthru
      _
    %v32 = vld [vmem:[%s0] sm:$0xff]
    %v33 = vld [vmem:[%s0 + $0x8] sm:$0xff]
    %v34 = vld [vmem:[%s2] sm:$0xff]
    %v35 = vld [vmem:[%s2 + $0x8] sm:$0xff]
    %v36 = vld [vmem:[%s2 + $0x10] sm:$0xff]
    %v37 = vld [vmem:[%s2 + $0x18] sm:$0xff]
    %v38 = vld [vmem:[%s3] sm:$0x1]
    %v40 = vperm.slane %v38, 0
    %vm42 = vcmask 261120
    %v44 = vsel %vm42, %v32, 0
    %v47 = vsel %vm42, %v33, 0
    %49 = vmatpush.msra.mxu0 0.0
    %50 = vmatpush.msra.mxu0 0.0
    %51 = vmatpush.msra.mxu0 0.0
    %52 = vmatpush.msra.mxu0 0.0
    %53 = vmatpush.msra.mxu0 0.0
    %54 = vmatpush.msra.mxu0 0.0
    %55 = vmatpush.msra.mxu0 0.0
    %56 = vmatpush.msra.mxu0 0.0
    %57 = vmatpush.msra.mxu0 0.0
    %58 = vmatpush.msra.mxu0 0.0
    %59 = vmatpush.msra.mxu0 0.0
    %60 = vmatpush.msra.mxu0 0.0
    %61 = vmatpush.msra.mxu0 %v37
    %62 = vmatpush.msra.mxu0 %v36
    %63 = vmatpush.msra.mxu0 %v35
    %64 = vmatpush.msra.mxu0 %v34
    %65 = vmatmul.f32.gmra.mxu0 %v44
    %v66 = vpop.f32.mrf.mxu0
    %v67 = vadd.f32 %v40, %v66
    %68 = vmatmul.f32.gmra.mxu0 %v47
    %v69 = vpop.f32.mrf.mxu0
    %v70 = vadd.f32 %v40, %v69
    %71 = vdwg.mxu0
    %v72 = vmax.f32 %v67, 0.0
    %v73 = vmax.f32 %v70, 0.0
    %v74 = vld [vmem:[%s4] sm:$0xff]
    %v75 = vld [vmem:[%s4 + $0x8] sm:$0xff]
    %v76 = vld [vmem:[%s4 + $0x10] sm:$0xff]
    %v77 = vld [vmem:[%s4 + $0x18] sm:$0xff]
    %v78 = vld [vmem:[%s4 + $0x20] sm:$0xff]
    %v79 = vld [vmem:[%s4 + $0x28] sm:$0xff]
    %v80 = vld [vmem:[%s4 + $0x30] sm:$0xff]
    %v81 = vld [vmem:[%s4 + $0x38] sm:$0xff]
    %v82 = vld [vmem:[#allocation2] sm:$0x1]
    %v84 = vperm.slane %v82, 0
    %vm86 = vcmask 523264
    %v88 = vsel %vm86, %v72, 0
    %v91 = vsel %vm86, %v73, 0
    %93 = vmatpush.msra.mxu0 0.0
    %94 = vmatpush.msra.mxu0 0.0
    %95 = vmatpush.msra.mxu0 0.0
    %96 = vmatpush.msra.mxu0 0.0
    %97 = vmatpush.msra.mxu0 0.0
    %98 = vmatpush.msra.mxu0 0.0
    %99 = vmatpush.msra.mxu0 0.0
    %100 = vmatpush.msra.mxu0 0.0
    %101 = vmatpush.msra.mxu0 %v81
    %102 = vmatpush.msra.mxu0 %v80
    %103 = vmatpush.msra.mxu0 %v79
    %104 = vmatpush.msra.mxu0 %v78
    %105 = vmatpush.msra.mxu0 %v77
    %106 = vmatpush.msra.mxu0 %v76
    %107 = vmatpush.msra.mxu0 %v75
    %108 = vmatpush.msra.mxu0 %v74
    %109 = vmatmul.f32.gmra.mxu0 %v88
    %v110 = vpop.f32.mrf.mxu0
    %v111 = vadd.f32 %v84, %v110
    %112 = vmatmul.f32.gmra.mxu0 %v91
    %v113 = vpop.f32.mrf.mxu0
    %v114 = vadd.f32 %v84, %v113
    %115 = vdwg.mxu0
    %v116 = vld [vmem:[%s1] sm:$0xff]
    %v117 = vld [vmem:[%s1 + $0x8] sm:$0xff]
    %vm118 = vcmp.ne.s32.totalorder %v116, 0
    %vm119 = vcmp.ne.s32.totalorder %v117, 0
    %v120 = vsel %vm118, -65504.0, %v111
    %v121 = vsel %vm119, -65504.0, %v114
    %vm122 = vcmask 7168
    %v123 = vsel %vm122, %v120, -inf
    %v124 = vrot.slane %v123, 4
    %v125 = vmax.f32 %v123, %v124
    %v126 = vrot.slane %v125, 2
    %v127 = vmax.f32 %v125, %v126
    %v128 = vrot.slane %v127, 1
    %v129 = vmax.f32 %v127, %v128
    %v130 = vsel %vm122, %v121, -inf
    %v131 = vrot.slane %v130, 4
    %v132 = vmax.f32 %v130, %v131
    %v133 = vrot.slane %v132, 2
    %v134 = vmax.f32 %v132, %v133
    %v135 = vrot.slane %v134, 1
    %v136 = vmax.f32 %v134, %v135
    %v137 = vsub.f32 %v120, %v129
    %v138 = vsub.f32 %v121, %v136
    %v139 = vmul.f32 %v137, 1.442695
    %v140 = vpow.pop %v139
    %v141 = vmul.f32 %v138, 1.442695
    %v142 = vpow.pop %v141
    %v143 = vsel %vm122, %v140, 0.0
    %v144 = vrot.slane %v143, 4
    %v145 = vadd.f32 %v143, %v144
    %v146 = vrot.slane %v145, 2
    %v147 = vadd.f32 %v145, %v146
    %v148 = vrot.slane %v147, 1
    %v149 = vadd.f32 %v147, %v148
    %v150 = vsel %vm122, %v142, 0.0
    %v151 = vrot.slane %v150, 4
    %v152 = vadd.f32 %v150, %v151
    %v153 = vrot.slane %v152, 2
    %v154 = vadd.f32 %v152, %v153
    %v155 = vrot.slane %v154, 1
    %v156 = vadd.f32 %v154, %v155
    %v157 = vrcp.pop %v149
    %v158 = vrcp.pop %v156
    %v159 = vmul.f32 %v140, %v157
    %v160 = vmul.f32 %v142, %v158
    %162 = vset.pattern.permute.xlu0 0
    %163 = vperm.xlu0 %162, %v159
    %v164 = vpop.permute.xlu0 %163
    %167 = vset.pattern.permute.xlu0 0
    %168 = vperm.xlu0 %167, %v160
    %v169 = vpop.permute.xlu0 %168
    %v171 = vmul.f32 %v164, %v32
    %v172 = vmul.f32 %v169, %v33
    %v173 = vsel %vm42, %v171, 0.0
    %v174 = vrot.slane %v173, 4
    %v175 = vadd.f32 %v173, %v174
    %v176 = vrot.slane %v175, 2
    %v177 = vadd.f32 %v175, %v176
    %v178 = vrot.slane %v177, 1
    %v179 = vadd.f32 %v177, %v178
    %v180 = vsel %vm42, %v172, 0.0
    %v181 = vrot.slane %v180, 4
    %v182 = vadd.f32 %v180, %v181
    %v183 = vrot.slane %v182, 2
    %v184 = vadd.f32 %v182, %v183
    %v185 = vrot.slane %v184, 1
    %v186 = vadd.f32 %v184, %v185
    %v187 = vld [vmem:[%s6] sm:$0xff]
    %v188 = vld [vmem:[%s6 + $0x8] sm:$0xff]
    %v189 = vld [vmem:[%s6 + $0x10] sm:$0xff]
    %v190 = vld [vmem:[%s6 + $0x18] sm:$0xff]
    %v191 = vld [vmem:[%s7] sm:$0x1]
    %v193 = vperm.slane %v191, 0
    %vm197 = vcmask 1041409
    %v198 = vsel %vm197, %v186, %v179
    %v199 = vsel %vm42, %v198, 0
    %201 = vmatpush.msra.mxu0 0.0
    %202 = vmatpush.msra.mxu0 0.0
    %203 = vmatpush.msra.mxu0 0.0
    %204 = vmatpush.msra.mxu0 0.0
    %205 = vmatpush.msra.mxu0 0.0
    %206 = vmatpush.msra.mxu0 0.0
    %207 = vmatpush.msra.mxu0 0.0
    %208 = vmatpush.msra.mxu0 0.0
    %209 = vmatpush.msra.mxu0 0.0
    %210 = vmatpush.msra.mxu0 0.0
    %211 = vmatpush.msra.mxu0 0.0
    %212 = vmatpush.msra.mxu0 0.0
    %213 = vmatpush.msra.mxu0 %v190
    %214 = vmatpush.msra.mxu0 %v189
    %215 = vmatpush.msra.mxu0 %v188
    %216 = vmatpush.msra.mxu0 %v187
    %217 = vmatmul.f32.gmra.mxu0 %v199
    %v218 = vpop.f32.mrf.mxu0
    %v219 = vadd.f32 %v193, %v218
    %220 = vdwg.mxu0
    %vm221 = vcmask 254976
    %222 = vst.msk [vmem:[#allocation3] sm:$0x3] %vm221, %v219
    // Predicated region
    $region34: #{tpu_custom_call.1} parent=1 // pred_check
      _
    $region35: #{tpu_custom_call.1} parent=1 // pred_check_branch
      %224 = sbr.rel (0) target = $region37
    $region36: #{tpu_custom_call.1} parent=1 // pred_region
      %226 = vsyncadd [#allocation4], 0
      %s228 = sshll.u32 [#allocation3], 4
      %s229 = int_to_ptr.vmem [resolvable:$true] %s228
      %s230 = sshll.u32 %s8, 4
      %s231 = int_to_ptr.hbm [resolvable:$true] %s230
      %233 = dma.vmem_to_hbm [thread:$0]  %s229, 32, %s231, [#allocation4]
    $region37: #{tpu_custom_call.1} parent=1 // pred_fallthru
      _
    // Predicated region
    $region38: #{tpu_custom_call.1} parent=1 // pred_check
      _
    $region39: #{tpu_custom_call.1} parent=1 // pred_check_branch
      %235 = sbr.rel (0) target = $region41
    $region40: #{tpu_custom_call.1} parent=1 // pred_region
      %237 = dma.done [#allocation4], 32
    $region41: #{tpu_custom_call.1} parent=1 // pred_fallthru
      _
    %238 = vsyncpa [#allocation4], 1

</llo_original>
